<compile_context>
chip_gen: v5e
topology: v5e:2x2
jax: 0.10.0
libtpu: 0.0.40
codegen_flags: <defaults>
</compile_context>

<pallas_src>
import jax
import jax.numpy as jnp
from jax.experimental import pallas as pl
from jax.experimental.pallas import tpu as pltpu


def _sigmoid_mul_kernel(scale_ref, x_ref, o_ref):
    # scale_ref: (br, 1)   -- per-channel pre-sigmoid gate
    # x_ref:     (br, HW)  -- feature-map tile
    s = jax.nn.sigmoid(scale_ref[...].astype(jnp.float32))  # EUP exp path, f32
    o_ref[...] = (s.astype(x_ref.dtype) * x_ref[...]).astype(o_ref.dtype)


def _pick_block_rows(rows, hw, itemsize):
    """Rows per block: multiple of 8, ~1 MiB feature tile, >=4 (even) steps.

    - ~1 MiB tiles sit in the 0.5–2 MiB band that reaches ~85% of HBM roofline
      and keep double-buffered in+out traffic a few MiB (fits v7x 64 MiB VMEM).
    - An even step count >= 4 gives each v7x TensorCore >= 2 pipelined steps
      (DMA/compute overlap) with balanced megacore sharding.
    - Pallas masks the ragged last block, so rows need not divide evenly.
    """
    if rows < 8:
        return rows  # full-dim block; can't tile below the sublane granule
    row_bytes = max(1, hw * itemsize)
    target_bytes = 1 << 20  # ~1 MiB per feature tile
    steps = max(4, pl.cdiv(rows * row_bytes, target_bytes))
    steps += steps % 2                               # even -> balanced 2-core split
    br = pl.cdiv(pl.cdiv(rows, steps), 8) * 8        # ceil(rows/steps) -> mult of 8
    br = min(br, (rows // 8) * 8)                    # never exceed whole-rows mult of 8
    return max(br, 8)


def sigmoid_mul(x145, x141, *, donate_features=False):
    """x145: (N, C, 1, 1) gate, x141: (N, C, H, W) features -> sigmoid(x145) * x141."""
    n, c, h, w = x141.shape
    assert x145.shape == (n, c, 1, 1)

    rows = n * c
    hw = h * w
    scale = x145.reshape(rows, 1)
    feats = x141.reshape(rows, hw)

    br = _pick_block_rows(rows, hw, feats.dtype.itemsize)
    grid_rows = pl.cdiv(rows, br)

    call_kwargs = {}
    if donate_features:
        # Alias the feature input (arg index 1) onto the single output; only
        # valid when the caller no longer needs x141 (buffer is donated).
        call_kwargs["input_output_aliases"] = {1: 0}

    out = pl.pallas_call(
        _sigmoid_mul_kernel,
        out_shape=jax.ShapeDtypeStruct((rows, hw), x141.dtype),
        grid_spec=pl.GridSpec(
            grid=(grid_rows,),
            in_specs=[
                pl.BlockSpec((br, 1), lambda i: (i, 0)),
                pl.BlockSpec((br, hw), lambda i: (i, 0)),
            ],
            out_specs=pl.BlockSpec((br, hw), lambda i: (i, 0)),
        ),
        compiler_params=pltpu.CompilerParams(
            dimension_semantics=("parallel",),
        ),
        **call_kwargs,
    )(scale, feats)

    return out.reshape(n, c, h, w)


if __name__ == "__main__":
    key = jax.random.PRNGKey(0)
    k1, k2, k3, k4 = jax.random.split(key, 4)

    # Shapes from the reference module: x141 = (1, 336, 28, 28), x145 = (1, 336, 1, 1)
    x141 = jax.random.normal(k1, (1, 336, 28, 28), dtype=jnp.float32)
    x145 = jax.random.normal(k2, (1, 336, 1, 1), dtype=jnp.float32)

    out = sigmoid_mul(x145, x141)
    out = jax.block_until_ready(out)

    ref = jax.nn.sigmoid(x145) * x141
    assert out.shape == (1, 336, 28, 28)
    assert jnp.allclose(out, ref, atol=1e-5, rtol=1e-5)

    # Batched sanity check (N folded into the row axis, ragged / small shapes).
    xb = jax.random.normal(k3, (2, 16, 8, 8), dtype=jnp.float32)
    sb = jax.random.normal(k4, (2, 16, 1, 1), dtype=jnp.float32)
    out_b = jax.block_until_ready(sigmoid_mul(sb, xb))
    ref_b = jax.nn.sigmoid(sb) * xb
    assert out_b.shape == (2, 16, 8, 8)
    assert jnp.allclose(out_b, ref_b, atol=1e-5, rtol=1e-5)

    print("KERNEL_OK")
</pallas_src>

<mosaic_0001>
module attributes {stable_mosaic.version = 11 : i64} {
  func.func @_sigmoid_mul_kernel(%arg0: i32, %arg1: memref<88x1xf32, #tpu.memory_space<vmem>>, %arg2: memref<88x784xf32, #tpu.memory_space<vmem>>, %arg3: memref<88x784xf32, #tpu.memory_space<vmem>>) attributes {dimension_semantics = [#tpu.dimension_semantics<parallel>], iteration_bounds = array<i64: 4>, scalar_prefetch = 0 : i64, scratch_operands = 0 : i64, tpu.core_type = #tpu.core_type<tc>, window_params = [{transform_indices = @transform_0, window_bounds = array<i64: 88, 1>}, {transform_indices = @transform_1, window_bounds = array<i64: 88, 784>}, {transform_indices = @transform_2, window_bounds = array<i64: 88, 784>}]} {
    %c0 = arith.constant 0 : index
    %c0_0 = arith.constant 0 : index
    %0 = vector.load %arg1[%c0, %c0_0] : memref<88x1xf32, #tpu.memory_space<vmem>>, vector<88x1xf32>
    %1 = arith.negf %0 : vector<88x1xf32>
    %2 = math.exp %1 : vector<88x1xf32>
    %cst = arith.constant 1.000000e+00 : f32
    %3 = vector.broadcast %cst : f32 to vector<88x1xf32>
    %4 = arith.addf %3, %2 : vector<88x1xf32>
    %5 = arith.divf %3, %4 : vector<88x1xf32>
    %c0_1 = arith.constant 0 : index
    %c0_2 = arith.constant 0 : index
    %6 = vector.load %arg2[%c0_1, %c0_2] : memref<88x784xf32, #tpu.memory_space<vmem>>, vector<88x784xf32>
    %7 = vector.broadcast %5 : vector<88x1xf32> to vector<88x784xf32>
    %8 = arith.mulf %7, %6 : vector<88x784xf32>
    %c0_3 = arith.constant 0 : index
    %c0_4 = arith.constant 0 : index
    %9 = vector.load %arg3[%c0_3, %c0_4] : memref<88x784xf32, #tpu.memory_space<vmem>>, vector<88x784xf32>
    tpu.vector_store %arg3[%c0_3, %c0_4], %8 {strides = array<i32>} : memref<88x784xf32, #tpu.memory_space<vmem>>, vector<88x784xf32>,
    return
  }
  func.func @transform_0(%arg0: i32) -> (i32, i32) {
    %c0_i32 = arith.constant 0 : i32
    %c0_i32_0 = arith.constant 0 : i32
    return %arg0, %c0_i32 : i32, i32
  }
  func.func @transform_1(%arg0: i32) -> (i32, i32) {
    %c0_i32 = arith.constant 0 : i32
    %c0_i32_0 = arith.constant 0 : i32
    return %arg0, %c0_i32 : i32, i32
  }
  func.func @transform_2(%arg0: i32) -> (i32, i32) {
    %c0_i32 = arith.constant 0 : i32
    %c0_i32_0 = arith.constant 0 : i32
    return %arg0, %c0_i32 : i32, i32
  }
}

</mosaic_0001>

<llo_original>
// kernel: tpu_custom_call.1
$region0: #{tpu_custom_call.1}
  #allocation0 [shape = 'u32[]', space=smem, size = 0x4, offset = 0x4, fixed_abs, tag = 'smem constant byte address 0x4 - core index']
  #allocation1 [shape = 'u32[72,128]{1,0:T(1,128)}', space=vmem, size = 0x9000, scoped, tag = 'internal scratch']
  %s0 = inlined_call_operand.vmem [shape: f32[336,1], index: 0, kind: input, shape index: {}]
  %s1 = inlined_call_operand.hbm [shape: f32[336,784], index: 1, kind: input, shape index: {}]
  %s2 = inlined_call_operand.hbm [shape: f32[336,784], index: 2, kind: output, shape index: {}]
  %s3 = sld [smem:[#allocation0]]
  $region45: #{tpu_custom_call.1} parent=0
    _
  %s5 = ssub.s32 1, %s3
  %s6 = scalar_select 0, %s5, %s3
  $region1: #{tpu_custom_call.1} parent=0
    #allocation2 [shape = 'u8[630784]{0}', space=vmem, size = 0x9a000, scoped, tag = 'input window, operand 1']
    #allocation3 [shape = 's32[2]{0}', space=sflag, size = 0x8, scoped, tag = 'scoped memory for tpu_custom_call.1']
    #allocation4 [shape = 's32[2]{0}', space=sflag, size = 0x8, scoped, tag = 'scoped memory for tpu_custom_call.1']
    #allocation5 [shape = 'u8[630784]{0}', space=vmem, size = 0x9a000, scoped, tag = 'output window, operand 0']
    %7 = vsyncpa [#allocation3], 0
    %s8 = scalar_lea.sflag [#allocation3], 1
    %9 = vsyncpa %s8, 0
    %10 = vsyncpa [#allocation4], 0
    %s11 = scalar_lea.sflag [#allocation4], 1
    %12 = vsyncpa %s11, 0
    loop: start=0, step=1, limit=6
    $region2: #{tpu_custom_call.1} parent=1 // loop_pre_header
      _
    $region3: #{tpu_custom_call.1} parent=1 // loop_header
      %s14 = sphi 0, %s18
      %p15 = scmp.ge.s32.totalorder %s14, 6
      %s24 = sphi 0, %s26
      %s27 = sphi 0, %s24
      %s28 = sphi 0, %s27
      %s44 = sphi 0, %s28
      %s50 = sphi 0, %s52
      %s53 = sphi 0, %s50
      %s54 = sphi 0, %s53
      %s70 = sphi 0, %s54
      %s76 = sphi 0, %s78
      %s79 = sphi 0, %s76
      %s80 = sphi 0, %s79
      %s96 = sphi 0, %s80
    $region4: #{tpu_custom_call.1} parent=1 // loop_header_branch
      %17 = sbr.rel (%p15) target = $region8
    $region5: #{tpu_custom_call.1} parent=1 // loop_body
      %s19 = ssub.s32 %s14, 1
      %s20 = ssub.s32 %s14, 2
      %s21 = sadd.s32 %s14, 1
      %s22 = ssub.s32 %s14, %s21
      %p23 = scmp.eq.s32.totalorder %s22, 0
      %s25 = sadd.s32 %s24, 1
      %s26 = scalar_select %p23, %s24, %s25
      %p29 = pneg %p23
      %p30 = scmp.eq.s32.totalorder %s14, 3
      %p31 = por %p29, %p30
      %p32 = scmp.ne.s32.totalorder %s24, %s27
      %p33 = scmp.eq.s32.totalorder %s14, 0
      %p34 = por %p32, %p33
      %p35 = scmp.ne.s32.totalorder %s24, %s27
      %p36 = scmp.eq.s32.totalorder %s19, 3
      %p37 = por %p35, %p36
      %p38 = scmp.ne.s32.totalorder %s27, %s28
      %p39 = scmp.eq.s32.totalorder %s19, 0
      %p40 = por %p38, %p39
      %p41 = scmp.ne.s32.totalorder %s27, %s28
      %p42 = scmp.eq.s32.totalorder %s20, 3
      %p43 = por %p41, %p42
      %p45 = scmp.ne.s32.totalorder %s28, %s44
      %p46 = scmp.eq.s32.totalorder %s20, 0
      %p47 = por %p45, %p46
      %s48 = ssub.s32 %s14, %s21
      %p49 = scmp.eq.s32.totalorder %s48, 0
      %s51 = sadd.s32 %s50, 1
      %s52 = scalar_select %p49, %s50, %s51
      %p55 = pneg %p49
      %p56 = scmp.eq.s32.totalorder %s14, 3
      %p57 = por %p55, %p56
      %p58 = scmp.ne.s32.totalorder %s50, %s53
      %p59 = scmp.eq.s32.totalorder %s14, 0
      %p60 = por %p58, %p59
      %p61 = scmp.ne.s32.totalorder %s50, %s53
      %p62 = scmp.eq.s32.totalorder %s19, 3
      %p63 = por %p61, %p62
      %p64 = scmp.ne.s32.totalorder %s53, %s54
      %p65 = scmp.eq.s32.totalorder %s19, 0
      %p66 = por %p64, %p65
      %p67 = scmp.ne.s32.totalorder %s53, %s54
      %p68 = scmp.eq.s32.totalorder %s20, 3
      %p69 = por %p67, %p68
      %p71 = scmp.ne.s32.totalorder %s54, %s70
      %p72 = scmp.eq.s32.totalorder %s20, 0
      %p73 = por %p71, %p72
      %s74 = ssub.s32 %s14, %s21
      %p75 = scmp.eq.s32.totalorder %s74, 0
      %s77 = sadd.s32 %s76, 1
      %s78 = scalar_select %p75, %s76, %s77
      %p81 = pneg %p75
      %p82 = scmp.eq.s32.totalorder %s14, 3
      %p83 = por %p81, %p82
      %p84 = scmp.ne.s32.totalorder %s76, %s79
      %p85 = scmp.eq.s32.totalorder %s14, 0
      %p86 = por %p84, %p85
      %p87 = scmp.ne.s32.totalorder %s76, %s79
      %p88 = scmp.eq.s32.totalorder %s19, 3
      %p89 = por %p87, %p88
      %p90 = scmp.ne.s32.totalorder %s79, %s80
      %p91 = scmp.eq.s32.totalorder %s19, 0
      %p92 = por %p90, %p91
      %p93 = scmp.ne.s32.totalorder %s79, %s80
      %p94 = scmp.eq.s32.totalorder %s20, 3
      %p95 = por %p93, %p94
      %p97 = scmp.ne.s32.totalorder %s80, %s96
      %p98 = scmp.eq.s32.totalorder %s20, 0
      %p99 = por %p97, %p98
      %p100 = scmp.le.s32.totalorder 1, %s14
      %p101 = scmp.lt.s32.totalorder %s14, 5
      %p102 = pnand %p100, %p101
      %p103 = pneg %p102
      // Predicated region
      $region9: #{tpu_custom_call.1} parent=5 // pred_check
        _
      $region10: #{tpu_custom_call.1} parent=5 // pred_check_branch
        %105 = sbr.rel (%p102) target = $region12
      $region11: #{tpu_custom_call.1} parent=5 // pred_region
        %s106 = ssub.s32 %s14, 1
      $region12: #{tpu_custom_call.1} parent=5 // pred_fallthru
        _
      %p107 = scmp.lt.s32.totalorder %s14, 4
      // Predicated region
      $region13: #{tpu_custom_call.1} parent=5 // pred_check
        %p108 = pneg %p107
      $region14: #{tpu_custom_call.1} parent=5 // pred_check_branch
        %110 = sbr.rel (%p108) target = $region16
      $region15: #{tpu_custom_call.1} parent=5 // pred_region
        // Predicated region
        $region17: #{tpu_custom_call.1} parent=15 // pred_check
          %p111 = pneg %p34
        $region18: #{tpu_custom_call.1} parent=15 // pred_check_branch
          %113 = sbr.rel (%p111) target = $region20
        $region19: #{tpu_custom_call.1} parent=15 // pred_region
          %s114 = smul.u32 11, %s14
          %s115 = ssub.s32 42, %s114
          %p116 = scmp.lt.s32.totalorder %s115, 11
          %s117 = scalar_select %p116, %s115, 11
          %s118 = smul.u32 8, %s117
          %p119 = scmp.lt.s32.totalorder %s114, 41
          %s120 = scalar_select %p119, %s114, 41
          %s121 = smul.addr %s120, 8
          %s122 = scalar_lea.vmem %s0, %s121
          %s123 = smul.u32 11, %s14
          %s124 = ssub.s32 42, %s123
          %p125 = scmp.lt.s32.totalorder %s124, 11
          %s126 = scalar_select %p125, %s124, 11
          %s127 = smul.u32 8, %s126
        $region20: #{tpu_custom_call.1} parent=15 // pred_fallthru
          _
        // Predicated region
        $region21: #{tpu_custom_call.1} parent=15 // pred_check
          %p128 = pneg %p60
        $region22: #{tpu_custom_call.1} parent=15 // pred_check_branch
          %130 = sbr.rel (%p128) target = $region24
        $region23: #{tpu_custom_call.1} parent=15 // pred_region
          %s131 = sand.u32 %s50, 1
          %s132 = scalar_lea.sflag [#allocation3], %s131
          %s133 = sand.u32 %s50, 1
          %s134 = smul.addr %s133, 616
          %s135 = scalar_lea.vmem [#allocation2], %s134
          %s136 = smul.u32 11, %s14
          %s137 = ssub.s32 42, %s136
          %p138 = scmp.lt.s32.totalorder %s137, 11
          %s139 = scalar_select %p138, %s137, 11
          %s140 = smul.u32 8, %s139
          %s141 = smul.u32 %s140, 7
          %s142 = ssub.s32 616, %s141
          %s143 = sshll.u32 %s142, 4
          %144 = vsyncadd %s132, %s143
          %p145 = scmp.ne.s32.totalorder 0, %s141
          %s146 = smul.addr %s136, 7
          %s147 = smul.addr %s146, 8
          %s148 = scalar_lea.hbm %s1, %s147
          %s149 = smul.u32 56, %s139
          %s150 = sshll.u32 %s148, 4
          %s151 = int_to_ptr.hbm [resolvable:$true] %s150
          %s152 = sshll.u32 %s135, 4
          %s153 = int_to_ptr.vmem [resolvable:$true] %s152
          %s154 = sshll.u32 %s149, 4
          %158 = dma.hbm_to_vmem [thread:$0]  (%p145), %s151, %s154, %s153, %s132, 896, 896, 56
        $region24: #{tpu_custom_call.1} parent=15 // pred_fallthru
          _
      $region16: #{tpu_custom_call.1} parent=5 // pred_fallthru
        _
      %p159 = scmp.le.s32.totalorder 1, %s14
      %p160 = scmp.lt.s32.totalorder %s14, 5
      %p161 = pnand %p159, %p160
      %p162 = pneg %p161
      // Predicated region
      $region25: #{tpu_custom_call.1} parent=5 // pred_check
        _
      $region26: #{tpu_custom_call.1} parent=5 // pred_check_branch
        %164 = sbr.rel (%p161) target = $region28
      $region27: #{tpu_custom_call.1} parent=5 // pred_region
        %s165 = ssub.s32 %s14, 1
        %s166 = sand.u32 %s53, 1
        %s167 = scalar_lea.sflag [#allocation3], %s166
        %s168 = sand.u32 %s53, 1
        %s169 = smul.addr %s168, 616
        %s170 = scalar_lea.vmem [#allocation2], %s169
        // Predicated region
        $region29: #{tpu_custom_call.1} parent=27 // pred_check
          %p171 = pneg %p66
        $region30: #{tpu_custom_call.1} parent=27 // pred_check_branch
          %173 = sbr.rel (%p171) target = $region32
        $region31: #{tpu_custom_call.1} parent=27 // pred_region
          %175 = dma.done %s167, 9856
        $region32: #{tpu_custom_call.1} parent=27 // pred_fallthru
          _
        %s176 = smul.u32 11, %s19
        %s177 = ssub.s32 42, %s176
        %p178 = scmp.lt.s32.totalorder %s177, 11
        %s179 = scalar_select %p178, %s177, 11
        %s180 = smul.u32 8, %s179
        %p181 = scmp.lt.s32.totalorder %s176, 41
        %s182 = scalar_select %p181, %s176, 41
        %s183 = smul.addr %s182, 8
        %s184 = scalar_lea.vmem %s0, %s183
        %p185 = pneg %p40
        %p186 = pneg %p37
        %s187 = sand.u32 %s53, 1
        %s188 = scalar_lea.sflag [#allocation3], %s187
        %s189 = sand.u32 %s53, 1
        %s190 = smul.addr %s189, 616
        %s191 = scalar_lea.vmem [#allocation2], %s190
        %p192 = pneg %p66
        %p193 = pneg %p63
        %p194 = pneg %p92
        %p195 = pneg %p89
        %s196 = sand.u32 %s79, 1
        %s197 = scalar_lea.sflag [#allocation4], %s196
        %s198 = sand.u32 %s79, 1
        %s199 = smul.addr %s198, 616
        %s200 = scalar_lea.vmem [#allocation5], %s199
        %s201 = smul.u32 11, %s19
        %s202 = ssub.s32 42, %s201
        %p203 = scmp.lt.s32.totalorder %s202, 11
        %s204 = scalar_select %p203, %s202, 11
        %s205 = smul.u32 8, %s204
        %p206 = scmp.lt.s32.totalorder %s201, 41
        %s207 = scalar_select %p206, %s201, 41
        %s208 = smul.addr %s207, 8
        %s209 = scalar_lea.vmem %s0, %s208
        %s210 = smul.u32 11, %s19
        %s211 = ssub.s32 42, %s210
        %p212 = scmp.lt.s32.totalorder %s211, 11
        %s213 = scalar_select %p212, %s211, 11
        %s214 = smul.u32 8, %s213
        %s215 = smul.u32 11, %s19
        %s216 = ssub.s32 42, %s215
        %p217 = scmp.lt.s32.totalorder %s216, 11
        %s218 = scalar_select %p217, %s216, 11
        %s219 = smul.u32 8, %s218
        %s220 = smul.u32 %s219, 7
        %s221 = smul.u32 11, %s19
        %s222 = ssub.s32 42, %s221
        %p223 = scmp.lt.s32.totalorder %s222, 11
        %s224 = scalar_select %p223, %s222, 11
        %s225 = smul.u32 8, %s224
        %s226 = smul.u32 %s225, 7
        %v227 = vld [vmem:[%s209] sm:$0xff]
        %v228 = vld [vmem:[%s209 + $0x8] sm:$0xff]
        %v229 = vld [vmem:[%s209 + $0x10] sm:$0xff]
        %v230 = vld [vmem:[%s209 + $0x18] sm:$0xff]
        %v231 = vld [vmem:[%s209 + $0x20] sm:$0xff]
        %v232 = vld [vmem:[%s209 + $0x28] sm:$0xff]
        %v233 = vld [vmem:[%s209 + $0x30] sm:$0xff]
        %v234 = vld [vmem:[%s209 + $0x38] sm:$0xff]
        %v235 = vld [vmem:[%s209 + $0x40] sm:$0xff]
        %v236 = vld [vmem:[%s209 + $0x48] sm:$0xff]
        %v237 = vld [vmem:[%s209 + $0x50] sm:$0xff]
        %v238 = vxor.u32 %v227, 2147483648
        %v239 = vxor.u32 %v228, 2147483648
        %v240 = vxor.u32 %v229, 2147483648
        %v241 = vxor.u32 %v230, 2147483648
        %v242 = vxor.u32 %v231, 2147483648
        %v243 = vxor.u32 %v232, 2147483648
        %v244 = vxor.u32 %v233, 2147483648
        %v245 = vxor.u32 %v234, 2147483648
        %v246 = vxor.u32 %v235, 2147483648
        %v247 = vxor.u32 %v236, 2147483648
        %v248 = vxor.u32 %v237, 2147483648
        %v249 = vmul.f32 %v238, 1.442695
        %v250 = vpow.pop %v249
        %v251 = vmul.f32 %v239, 1.442695
        %v252 = vpow.pop %v251
        %v253 = vmul.f32 %v240, 1.442695
        %v254 = vpow.pop %v253
        %v255 = vmul.f32 %v241, 1.442695
        %v256 = vpow.pop %v255
        %v257 = vmul.f32 %v242, 1.442695
        %v258 = vpow.pop %v257
        %v259 = vmul.f32 %v243, 1.442695
        %v260 = vpow.pop %v259
        %v261 = vmul.f32 %v244, 1.442695
        %v262 = vpow.pop %v261
        %v263 = vmul.f32 %v245, 1.442695
        %v264 = vpow.pop %v263
        %v265 = vmul.f32 %v246, 1.442695
        %v266 = vpow.pop %v265
        %v267 = vmul.f32 %v247, 1.442695
        %v268 = vpow.pop %v267
        %v269 = vmul.f32 %v248, 1.442695
        %v270 = vpow.pop %v269
        %v271 = vadd.f32 %v250, 1.0
        %v272 = vadd.f32 %v252, 1.0
        %v273 = vadd.f32 %v254, 1.0
        %v274 = vadd.f32 %v256, 1.0
        %v275 = vadd.f32 %v258, 1.0
        %v276 = vadd.f32 %v260, 1.0
        %v277 = vadd.f32 %v262, 1.0
        %v278 = vadd.f32 %v264, 1.0
        %v279 = vadd.f32 %v266, 1.0
        %v280 = vadd.f32 %v268, 1.0
        %v281 = vadd.f32 %v270, 1.0
        %v282 = vrcp.pop %v271
        %v283 = vmul.f32 %v271, %v282
        %v284 = vsub.f32 1.0, %v283
        %v285 = vmul.f32 %v282, %v284
        %v286 = vadd.f32 %v282, %v285
        %vm287 = vweird.f32 %v271
        %vm288 = vweird.f32 %v282
        %vm289 = vmor %vm287, %vm288
        %v290 = vsel %vm289, %v282, %v286
        %v291 = vand.u32 2147483647, %v271
        %vm292 = vcmp.eq.f32.partialorder %v291, 8.507059e+37
        %v293 = vand.u32 %v271, 2147483648
        %v294 = vor.u32 1.1754944e-38, %v293
        %v295 = vsel %vm292, %v294, %v290
        %v296 = vmul.f32 1.0, %v295
        %v297 = vrcp.pop %v272
        %v298 = vmul.f32 %v272, %v297
        %v299 = vsub.f32 1.0, %v298
        %v300 = vmul.f32 %v297, %v299
        %v301 = vadd.f32 %v297, %v300
        %vm302 = vweird.f32 %v272
        %vm303 = vweird.f32 %v297
        %vm304 = vmor %vm302, %vm303
        %v305 = vsel %vm304, %v297, %v301
        %v306 = vand.u32 2147483647, %v272
        %vm307 = vcmp.eq.f32.partialorder %v306, 8.507059e+37
        %v308 = vand.u32 %v272, 2147483648
        %v309 = vor.u32 1.1754944e-38, %v308
        %v310 = vsel %vm307, %v309, %v305
        %v311 = vmul.f32 1.0, %v310
        %v312 = vrcp.pop %v273
        %v313 = vmul.f32 %v273, %v312
        %v314 = vsub.f32 1.0, %v313
        %v315 = vmul.f32 %v312, %v314
        %v316 = vadd.f32 %v312, %v315
        %vm317 = vweird.f32 %v273
        %vm318 = vweird.f32 %v312
        %vm319 = vmor %vm317, %vm318
        %v320 = vsel %vm319, %v312, %v316
        %v321 = vand.u32 2147483647, %v273
        %vm322 = vcmp.eq.f32.partialorder %v321, 8.507059e+37
        %v323 = vand.u32 %v273, 2147483648
        %v324 = vor.u32 1.1754944e-38, %v323
        %v325 = vsel %vm322, %v324, %v320
        %v326 = vmul.f32 1.0, %v325
        %v327 = vrcp.pop %v274
        %v328 = vmul.f32 %v274, %v327
        %v329 = vsub.f32 1.0, %v328
        %v330 = vmul.f32 %v327, %v329
        %v331 = vadd.f32 %v327, %v330
        %vm332 = vweird.f32 %v274
        %vm333 = vweird.f32 %v327
        %vm334 = vmor %vm332, %vm333
        %v335 = vsel %vm334, %v327, %v331
        %v336 = vand.u32 2147483647, %v274
        %vm337 = vcmp.eq.f32.partialorder %v336, 8.507059e+37
        %v338 = vand.u32 %v274, 2147483648
        %v339 = vor.u32 1.1754944e-38, %v338
        %v340 = vsel %vm337, %v339, %v335
        %v341 = vmul.f32 1.0, %v340
        %v342 = vrcp.pop %v275
        %v343 = vmul.f32 %v275, %v342
        %v344 = vsub.f32 1.0, %v343
        %v345 = vmul.f32 %v342, %v344
        %v346 = vadd.f32 %v342, %v345
        %vm347 = vweird.f32 %v275
        %vm348 = vweird.f32 %v342
        %vm349 = vmor %vm347, %vm348
        %v350 = vsel %vm349, %v342, %v346
        %v351 = vand.u32 2147483647, %v275
        %vm352 = vcmp.eq.f32.partialorder %v351, 8.507059e+37
        %v353 = vand.u32 %v275, 2147483648
        %v354 = vor.u32 1.1754944e-38, %v353
        %v355 = vsel %vm352, %v354, %v350
        %v356 = vmul.f32 1.0, %v355
        %v357 = vrcp.pop %v276
        %v358 = vmul.f32 %v276, %v357
        %v359 = vsub.f32 1.0, %v358
        %v360 = vmul.f32 %v357, %v359
        %v361 = vadd.f32 %v357, %v360
        %vm362 = vweird.f32 %v276
        %vm363 = vweird.f32 %v357
        %vm364 = vmor %vm362, %vm363
        %v365 = vsel %vm364, %v357, %v361
        %v366 = vand.u32 2147483647, %v276
        %vm367 = vcmp.eq.f32.partialorder %v366, 8.507059e+37
        %v368 = vand.u32 %v276, 2147483648
        %v369 = vor.u32 1.1754944e-38, %v368
        %v370 = vsel %vm367, %v369, %v365
        %v371 = vmul.f32 1.0, %v370
        %v372 = vrcp.pop %v277
        %v373 = vmul.f32 %v277, %v372
        %v374 = vsub.f32 1.0, %v373
        %v375 = vmul.f32 %v372, %v374
        %v376 = vadd.f32 %v372, %v375
        %vm377 = vweird.f32 %v277
        %vm378 = vweird.f32 %v372
        %vm379 = vmor %vm377, %vm378
        %v380 = vsel %vm379, %v372, %v376
        %v381 = vand.u32 2147483647, %v277
        %vm382 = vcmp.eq.f32.partialorder %v381, 8.507059e+37
        %v383 = vand.u32 %v277, 2147483648
        %v384 = vor.u32 1.1754944e-38, %v383
        %v385 = vsel %vm382, %v384, %v380
        %v386 = vmul.f32 1.0, %v385
        %v387 = vrcp.pop %v278
        %v388 = vmul.f32 %v278, %v387
        %v389 = vsub.f32 1.0, %v388
        %v390 = vmul.f32 %v387, %v389
        %v391 = vadd.f32 %v387, %v390
        %vm392 = vweird.f32 %v278
        %vm393 = vweird.f32 %v387
        %vm394 = vmor %vm392, %vm393
        %v395 = vsel %vm394, %v387, %v391
        %v396 = vand.u32 2147483647, %v278
        %vm397 = vcmp.eq.f32.partialorder %v396, 8.507059e+37
        %v398 = vand.u32 %v278, 2147483648
        %v399 = vor.u32 1.1754944e-38, %v398
        %v400 = vsel %vm397, %v399, %v395
        %v401 = vmul.f32 1.0, %v400
        %v402 = vrcp.pop %v279
        %v403 = vmul.f32 %v279, %v402
        %v404 = vsub.f32 1.0, %v403
        %v405 = vmul.f32 %v402, %v404
        %v406 = vadd.f32 %v402, %v405
        %vm407 = vweird.f32 %v279
        %vm408 = vweird.f32 %v402
        %vm409 = vmor %vm407, %vm408
        %v410 = vsel %vm409, %v402, %v406
        %v411 = vand.u32 2147483647, %v279
        %vm412 = vcmp.eq.f32.partialorder %v411, 8.507059e+37
        %v413 = vand.u32 %v279, 2147483648
        %v414 = vor.u32 1.1754944e-38, %v413
        %v415 = vsel %vm412, %v414, %v410
        %v416 = vmul.f32 1.0, %v415
        %v417 = vrcp.pop %v280
        %v418 = vmul.f32 %v280, %v417
        %v419 = vsub.f32 1.0, %v418
        %v420 = vmul.f32 %v417, %v419
        %v421 = vadd.f32 %v417, %v420
        %vm422 = vweird.f32 %v280
        %vm423 = vweird.f32 %v417
        %vm424 = vmor %vm422, %vm423
        %v425 = vsel %vm424, %v417, %v421
        %v426 = vand.u32 2147483647, %v280
        %vm427 = vcmp.eq.f32.partialorder %v426, 8.507059e+37
        %v428 = vand.u32 %v280, 2147483648
        %v429 = vor.u32 1.1754944e-38, %v428
        %v430 = vsel %vm427, %v429, %v425
        %v431 = vmul.f32 1.0, %v430
        %v432 = vrcp.pop %v281
        %v433 = vmul.f32 %v281, %v432
        %v434 = vsub.f32 1.0, %v433
        %v435 = vmul.f32 %v432, %v434
        %v436 = vadd.f32 %v432, %v435
        %vm437 = vweird.f32 %v281
        %vm438 = vweird.f32 %v432
        %vm439 = vmor %vm437, %vm438
        %v440 = vsel %vm439, %v432, %v436
        %v441 = vand.u32 2147483647, %v281
        %vm442 = vcmp.eq.f32.partialorder %v441, 8.507059e+37
        %v443 = vand.u32 %v281, 2147483648
        %v444 = vor.u32 1.1754944e-38, %v443
        %v445 = vsel %vm442, %v444, %v440
        %v446 = vmul.f32 1.0, %v445
        %v447 = vld [vmem:[%s170] sm:$0xff]
        %v448 = vld [vmem:[%s170 + $0x8] sm:$0xff]
        %v449 = vld [vmem:[%s170 + $0x10] sm:$0xff]
        %v450 = vld [vmem:[%s170 + $0x18] sm:$0xff]
        %v451 = vld [vmem:[%s170 + $0x20] sm:$0xff]
        %v452 = vld [vmem:[%s170 + $0x28] sm:$0xff]
        %v453 = vld [vmem:[%s170 + $0x30] sm:$0xff]
        %v454 = vld [vmem:[%s170 + $0x38] sm:$0xff]
        %v455 = vld [vmem:[%s170 + $0x40] sm:$0xff]
        %v456 = vld [vmem:[%s170 + $0x48] sm:$0xff]
        %v457 = vld [vmem:[%s170 + $0x50] sm:$0xff]
        %v458 = vld [vmem:[%s170 + $0x58] sm:$0xff]
        %v459 = vld [vmem:[%s170 + $0x60] sm:$0xff]
        %v460 = vld [vmem:[%s170 + $0x68] sm:$0xff]
        %v461 = vld [vmem:[%s170 + $0x70] sm:$0xff]
        %v462 = vld [vmem:[%s170 + $0x78] sm:$0xff]
        %v463 = vld [vmem:[%s170 + $0x80] sm:$0xff]
        %v464 = vld [vmem:[%s170 + $0x88] sm:$0xff]
        %v465 = vld [vmem:[%s170 + $0x90] sm:$0xff]
        %v466 = vld [vmem:[%s170 + $0x98] sm:$0xff]
        %v467 = vld [vmem:[%s170 + $0xa0] sm:$0xff]
        %v468 = vld [vmem:[%s170 + $0xa8] sm:$0xff]
        %v469 = vld [vmem:[%s170 + $0xb0] sm:$0xff]
        %v470 = vld [vmem:[%s170 + $0xb8] sm:$0xff]
        %v471 = vld [vmem:[%s170 + $0xc0] sm:$0xff]
        %v472 = vld [vmem:[%s170 + $0xc8] sm:$0xff]
        %v473 = vld [vmem:[%s170 + $0xd0] sm:$0xff]
        %v474 = vld [vmem:[%s170 + $0xd8] sm:$0xff]
        %v475 = vld [vmem:[%s170 + $0xe0] sm:$0xff]
        %v476 = vld [vmem:[%s170 + $0xe8] sm:$0xff]
        %v477 = vld [vmem:[%s170 + $0xf0] sm:$0xff]
        %v478 = vld [vmem:[%s170 + $0xf8] sm:$0xff]
        %v479 = vld [vmem:[%s170 + $0x100] sm:$0xff]
        %v480 = vld [vmem:[%s170 + $0x108] sm:$0xff]
        %v481 = vld [vmem:[%s170 + $0x110] sm:$0xff]
        %v482 = vld [vmem:[%s170 + $0x118] sm:$0xff]
        %v483 = vld [vmem:[%s170 + $0x120] sm:$0xff]
        %v484 = vld [vmem:[%s170 + $0x128] sm:$0xff]
        %v485 = vld [vmem:[%s170 + $0x130] sm:$0xff]
        %v486 = vld [vmem:[%s170 + $0x138] sm:$0xff]
        %v487 = vld [vmem:[%s170 + $0x140] sm:$0xff]
        %v488 = vld [vmem:[%s170 + $0x148] sm:$0xff]
        %v489 = vld [vmem:[%s170 + $0x150] sm:$0xff]
        %v490 = vld [vmem:[%s170 + $0x158] sm:$0xff]
        %v491 = vld [vmem:[%s170 + $0x160] sm:$0xff]
        %v492 = vld [vmem:[%s170 + $0x168] sm:$0xff]
        %v493 = vld [vmem:[%s170 + $0x170] sm:$0xff]
        %v494 = vld [vmem:[%s170 + $0x178] sm:$0xff]
        %v495 = vld [vmem:[%s170 + $0x180] sm:$0xff]
        %v496 = vld [vmem:[%s170 + $0x188] sm:$0xff]
        %v497 = vld [vmem:[%s170 + $0x190] sm:$0xff]
        %v498 = vld [vmem:[%s170 + $0x198] sm:$0xff]
        %v499 = vld [vmem:[%s170 + $0x1a0] sm:$0xff]
        %v500 = vld [vmem:[%s170 + $0x1a8] sm:$0xff]
        %v501 = vld [vmem:[%s170 + $0x1b0] sm:$0xff]
        %v502 = vld [vmem:[%s170 + $0x1b8] sm:$0xff]
        %v503 = vld [vmem:[%s170 + $0x1c0] sm:$0xff]
        %v504 = vld [vmem:[%s170 + $0x1c8] sm:$0xff]
        %v505 = vld [vmem:[%s170 + $0x1d0] sm:$0xff]
        %v506 = vld [vmem:[%s170 + $0x1d8] sm:$0xff]
        %v507 = vld [vmem:[%s170 + $0x1e0] sm:$0xff]
        %v508 = vld [vmem:[%s170 + $0x1e8] sm:$0xff]
        %v509 = vld [vmem:[%s170 + $0x1f0] sm:$0xff]
        %v510 = vld [vmem:[%s170 + $0x1f8] sm:$0xff]
        %v511 = vld [vmem:[%s170 + $0x200] sm:$0xff]
        %v512 = vld [vmem:[%s170 + $0x208] sm:$0xff]
        %v513 = vld [vmem:[%s170 + $0x210] sm:$0xff]
        %v514 = vld [vmem:[%s170 + $0x218] sm:$0xff]
        %v515 = vld [vmem:[%s170 + $0x220] sm:$0xff]
        %v516 = vld [vmem:[%s170 + $0x228] sm:$0xff]
        %v517 = vld [vmem:[%s170 + $0x230] sm:$0xff]
        %v518 = vld [vmem:[%s170 + $0x238] sm:$0xff]
        %v519 = vld [vmem:[%s170 + $0x240] sm:$0xff]
        %v520 = vld [vmem:[%s170 + $0x248] sm:$0xff]
        %v521 = vld [vmem:[%s170 + $0x250] sm:$0xff]
        %v522 = vld [vmem:[%s170 + $0x258] sm:$0xff]
        %v523 = vld [vmem:[%s170 + $0x260] sm:$0xff]
        %525 = vset.pattern.permute.xlu0 0
        %526 = vperm.xlu0 %525, %v296
        %v527 = vpop.permute.xlu0 %526
        %530 = vset.pattern.permute.xlu0 0
        %531 = vperm.xlu0 %530, %v311
        %v532 = vpop.permute.xlu0 %531
        %535 = vset.pattern.permute.xlu0 0
        %536 = vperm.xlu0 %535, %v326
        %v537 = vpop.permute.xlu0 %536
        %540 = vset.pattern.permute.xlu0 0
        %541 = vperm.xlu0 %540, %v341
        %v542 = vpop.permute.xlu0 %541
        %545 = vset.pattern.permute.xlu0 0
        %546 = vperm.xlu0 %545, %v356
        %v547 = vpop.permute.xlu0 %546
        %550 = vset.pattern.permute.xlu0 0
        %551 = vperm.xlu0 %550, %v371
        %v552 = vpop.permute.xlu0 %551
        %555 = vset.pattern.permute.xlu0 0
        %556 = vperm.xlu0 %555, %v386
        %v557 = vpop.permute.xlu0 %556
        %560 = vset.pattern.permute.xlu0 0
        %561 = vperm.xlu0 %560, %v401
        %v562 = vpop.permute.xlu0 %561
        %565 = vset.pattern.permute.xlu0 0
        %566 = vperm.xlu0 %565, %v416
        %v567 = vpop.permute.xlu0 %566
        %570 = vset.pattern.permute.xlu0 0
        %571 = vperm.xlu0 %570, %v431
        %v572 = vpop.permute.xlu0 %571
        %575 = vset.pattern.permute.xlu0 0
        %576 = vperm.xlu0 %575, %v446
        %v577 = vpop.permute.xlu0 %576
        %v579 = vmul.f32 %v527, %v447
        %v580 = vmul.f32 %v527, %v448
        %v581 = vmul.f32 %v527, %v449
        %v582 = vmul.f32 %v527, %v450
        %v583 = vmul.f32 %v527, %v451
        %v584 = vmul.f32 %v527, %v452
        %v585 = vmul.f32 %v527, %v453
        %v586 = vmul.f32 %v532, %v454
        %v587 = vmul.f32 %v532, %v455
        %v588 = vmul.f32 %v532, %v456
        %v589 = vmul.f32 %v532, %v457
        %v590 = vmul.f32 %v532, %v458
        %v591 = vmul.f32 %v532, %v459
        %v592 = vmul.f32 %v532, %v460
        %v593 = vmul.f32 %v537, %v461
        %v594 = vmul.f32 %v537, %v462
        %v595 = vmul.f32 %v537, %v463
        %v596 = vmul.f32 %v537, %v464
        %v597 = vmul.f32 %v537, %v465
        %v598 = vmul.f32 %v537, %v466
        %v599 = vmul.f32 %v537, %v467
        %v600 = vmul.f32 %v542, %v468
        %v601 = vmul.f32 %v542, %v469
        %v602 = vmul.f32 %v542, %v470
        %v603 = vmul.f32 %v542, %v471
        %v604 = vmul.f32 %v542, %v472
        %v605 = vmul.f32 %v542, %v473
        %v606 = vmul.f32 %v542, %v474
        %v607 = vmul.f32 %v547, %v475
        %v608 = vmul.f32 %v547, %v476
        %v609 = vmul.f32 %v547, %v477
        %v610 = vmul.f32 %v547, %v478
        %v611 = vmul.f32 %v547, %v479
        %v612 = vmul.f32 %v547, %v480
        %v613 = vmul.f32 %v547, %v481
        %v614 = vmul.f32 %v552, %v482
        %v615 = vmul.f32 %v552, %v483
        %v616 = vmul.f32 %v552, %v484
        %v617 = vmul.f32 %v552, %v485
        %v618 = vmul.f32 %v552, %v486
        %v619 = vmul.f32 %v552, %v487
        %v620 = vmul.f32 %v552, %v488
        %v621 = vmul.f32 %v557, %v489
        %v622 = vmul.f32 %v557, %v490
        %v623 = vmul.f32 %v557, %v491
        %v624 = vmul.f32 %v557, %v492
        %v625 = vmul.f32 %v557, %v493
        %v626 = vmul.f32 %v557, %v494
        %v627 = vmul.f32 %v557, %v495
        %v628 = vmul.f32 %v562, %v496
        %v629 = vmul.f32 %v562, %v497
        %v630 = vmul.f32 %v562, %v498
        %v631 = vmul.f32 %v562, %v499
        %v632 = vmul.f32 %v562, %v500
        %v633 = vmul.f32 %v562, %v501
        %v634 = vmul.f32 %v562, %v502
        %v635 = vmul.f32 %v567, %v503
        %v636 = vmul.f32 %v567, %v504
        %v637 = vmul.f32 %v567, %v505
        %v638 = vmul.f32 %v567, %v506
        %v639 = vmul.f32 %v567, %v507
        %v640 = vmul.f32 %v567, %v508
        %v641 = vmul.f32 %v567, %v509
        %v642 = vmul.f32 %v572, %v510
        %v643 = vmul.f32 %v572, %v511
        %v644 = vmul.f32 %v572, %v512
        %v645 = vmul.f32 %v572, %v513
        %v646 = vmul.f32 %v572, %v514
        %v647 = vmul.f32 %v572, %v515
        %v648 = vmul.f32 %v572, %v516
        %v649 = vmul.f32 %v577, %v517
        %v650 = vmul.f32 %v577, %v518
        %v651 = vmul.f32 %v577, %v519
        %v652 = vmul.f32 %v577, %v520
        %v653 = vmul.f32 %v577, %v521
        %v654 = vmul.f32 %v577, %v522
        %v655 = vmul.f32 %v577, %v523
        %656 = vst [vmem:[%s200] sm:$0xff] %v579
        %657 = vst [vmem:[%s200 + $0x8] sm:$0xff] %v580
        %658 = vst [vmem:[%s200 + $0x10] sm:$0xff] %v581
        %659 = vst [vmem:[%s200 + $0x18] sm:$0xff] %v582
        %660 = vst [vmem:[%s200 + $0x20] sm:$0xff] %v583
        %661 = vst [vmem:[%s200 + $0x28] sm:$0xff] %v584
        %vm662 = vcmask 130048
        %663 = vst.msk [vmem:[%s200 + $0x30] sm:$0xff] %vm662, %v585
        %664 = vst [vmem:[%s200 + $0x38] sm:$0xff] %v586
        %665 = vst [vmem:[%s200 + $0x40] sm:$0xff] %v587
        %666 = vst [vmem:[%s200 + $0x48] sm:$0xff] %v588
        %667 = vst [vmem:[%s200 + $0x50] sm:$0xff] %v589
        %668 = vst [vmem:[%s200 + $0x58] sm:$0xff] %v590
        %669 = vst [vmem:[%s200 + $0x60] sm:$0xff] %v591
        %670 = vst.msk [vmem:[%s200 + $0x68] sm:$0xff] %vm662, %v592
        %671 = vst [vmem:[%s200 + $0x70] sm:$0xff] %v593
        %672 = vst [vmem:[%s200 + $0x78] sm:$0xff] %v594
        %673 = vst [vmem:[%s200 + $0x80] sm:$0xff] %v595
        %674 = vst [vmem:[%s200 + $0x88] sm:$0xff] %v596
        %675 = vst [vmem:[%s200 + $0x90] sm:$0xff] %v597
        %676 = vst [vmem:[%s200 + $0x98] sm:$0xff] %v598
        %677 = vst.msk [vmem:[%s200 + $0xa0] sm:$0xff] %vm662, %v599
        %678 = vst [vmem:[%s200 + $0xa8] sm:$0xff] %v600
        %679 = vst [vmem:[%s200 + $0xb0] sm:$0xff] %v601
        %680 = vst [vmem:[%s200 + $0xb8] sm:$0xff] %v602
        %681 = vst [vmem:[%s200 + $0xc0] sm:$0xff] %v603
        %682 = vst [vmem:[%s200 + $0xc8] sm:$0xff] %v604
        %683 = vst [vmem:[%s200 + $0xd0] sm:$0xff] %v605
        %684 = vst.msk [vmem:[%s200 + $0xd8] sm:$0xff] %vm662, %v606
        %685 = vst [vmem:[%s200 + $0xe0] sm:$0xff] %v607
        %686 = vst [vmem:[%s200 + $0xe8] sm:$0xff] %v608
        %687 = vst [vmem:[%s200 + $0xf0] sm:$0xff] %v609
        %688 = vst [vmem:[%s200 + $0xf8] sm:$0xff] %v610
        %689 = vst [vmem:[%s200 + $0x100] sm:$0xff] %v611
        %690 = vst [vmem:[%s200 + $0x108] sm:$0xff] %v612
        %691 = vst.msk [vmem:[%s200 + $0x110] sm:$0xff] %vm662, %v613
        %692 = vst [vmem:[%s200 + $0x118] sm:$0xff] %v614
        %693 = vst [vmem:[%s200 + $0x120] sm:$0xff] %v615
        %694 = vst [vmem:[%s200 + $0x128] sm:$0xff] %v616
        %695 = vst [vmem:[%s200 + $0x130] sm:$0xff] %v617
        %696 = vst [vmem:[%s200 + $0x138] sm:$0xff] %v618
        %697 = vst [vmem:[%s200 + $0x140] sm:$0xff] %v619
        %698 = vst.msk [vmem:[%s200 + $0x148] sm:$0xff] %vm662, %v620
        %699 = vst [vmem:[%s200 + $0x150] sm:$0xff] %v621
        %700 = vst [vmem:[%s200 + $0x158] sm:$0xff] %v622
        %701 = vst [vmem:[%s200 + $0x160] sm:$0xff] %v623
        %702 = vst [vmem:[%s200 + $0x168] sm:$0xff] %v624
        %703 = vst [vmem:[%s200 + $0x170] sm:$0xff] %v625
        %704 = vst [vmem:[%s200 + $0x178] sm:$0xff] %v626
        %705 = vst.msk [vmem:[%s200 + $0x180] sm:$0xff] %vm662, %v627
        %706 = vst [vmem:[%s200 + $0x188] sm:$0xff] %v628
        %707 = vst [vmem:[%s200 + $0x190] sm:$0xff] %v629
        %708 = vst [vmem:[%s200 + $0x198] sm:$0xff] %v630
        %709 = vst [vmem:[%s200 + $0x1a0] sm:$0xff] %v631
        %710 = vst [vmem:[%s200 + $0x1a8] sm:$0xff] %v632
        %711 = vst [vmem:[%s200 + $0x1b0] sm:$0xff] %v633
        %712 = vst.msk [vmem:[%s200 + $0x1b8] sm:$0xff] %vm662, %v634
        %713 = vst [vmem:[%s200 + $0x1c0] sm:$0xff] %v635
        %714 = vst [vmem:[%s200 + $0x1c8] sm:$0xff] %v636
        %715 = vst [vmem:[%s200 + $0x1d0] sm:$0xff] %v637
        %716 = vst [vmem:[%s200 + $0x1d8] sm:$0xff] %v638
        %717 = vst [vmem:[%s200 + $0x1e0] sm:$0xff] %v639
        %718 = vst [vmem:[%s200 + $0x1e8] sm:$0xff] %v640
        %719 = vst.msk [vmem:[%s200 + $0x1f0] sm:$0xff] %vm662, %v641
        %720 = vst [vmem:[%s200 + $0x1f8] sm:$0xff] %v642
        %721 = vst [vmem:[%s200 + $0x200] sm:$0xff] %v643
        %722 = vst [vmem:[%s200 + $0x208] sm:$0xff] %v644
        %723 = vst [vmem:[%s200 + $0x210] sm:$0xff] %v645
        %724 = vst [vmem:[%s200 + $0x218] sm:$0xff] %v646
        %725 = vst [vmem:[%s200 + $0x220] sm:$0xff] %v647
        %726 = vst.msk [vmem:[%s200 + $0x228] sm:$0xff] %vm662, %v648
        %727 = vst [vmem:[%s200 + $0x230] sm:$0xff] %v649
        %728 = vst [vmem:[%s200 + $0x238] sm:$0xff] %v650
        %729 = vst [vmem:[%s200 + $0x240] sm:$0xff] %v651
        %730 = vst [vmem:[%s200 + $0x248] sm:$0xff] %v652
        %731 = vst [vmem:[%s200 + $0x250] sm:$0xff] %v653
        %732 = vst [vmem:[%s200 + $0x258] sm:$0xff] %v654
        %733 = vst.msk [vmem:[%s200 + $0x260] sm:$0xff] %vm662, %v655
        %s734 = sand.u32 %s79, 1
        %s735 = scalar_lea.sflag [#allocation4], %s734
        %s736 = sand.u32 %s79, 1
        %s737 = smul.addr %s736, 616
        %s738 = scalar_lea.vmem [#allocation5], %s737
        // Predicated region
        $region33: #{tpu_custom_call.1} parent=27 // pred_check
          %p739 = pneg %p89
        $region34: #{tpu_custom_call.1} parent=27 // pred_check_branch
          %741 = sbr.rel (%p739) target = $region36
        $region35: #{tpu_custom_call.1} parent=27 // pred_region
          %s742 = smul.u32 11, %s19
          %s743 = ssub.s32 42, %s742
          %p744 = scmp.lt.s32.totalorder %s743, 11
          %s745 = scalar_select %p744, %s743, 11
          %s746 = smul.u32 8, %s745
          %s747 = smul.u32 %s746, 7
          %s748 = ssub.s32 616, %s747
          %s749 = sshll.u32 %s748, 4
          %750 = vsyncadd %s735, %s749
          %p751 = scmp.ne.s32.totalorder 0, %s747
          %s752 = smul.addr %s742, 7
          %s753 = smul.addr %s752, 8
          %s754 = scalar_lea.hbm %s2, %s753
          %s755 = smul.u32 56, %s745
          %s756 = sshll.u32 %s738, 4
          %s757 = int_to_ptr.vmem [resolvable:$true] %s756
          %s758 = sshll.u32 %s754, 4
          %s759 = int_to_ptr.hbm [resolvable:$true] %s758
          %s760 = sshll.u32 %s755, 4
          %764 = dma.vmem_to_hbm [thread:$0]  (%p751), %s757, %s760, %s759, %s735, 896, 896, 56
        $region36: #{tpu_custom_call.1} parent=27 // pred_fallthru
          _
      $region28: #{tpu_custom_call.1} parent=5 // pred_fallthru
        _
      %p765 = scmp.le.s32.totalorder 2, %s14
      // Predicated region
      $region37: #{tpu_custom_call.1} parent=5 // pred_check
        %p766 = pneg %p765
      $region38: #{tpu_custom_call.1} parent=5 // pred_check_branch
        %768 = sbr.rel (%p766) target = $region40
      $region39: #{tpu_custom_call.1} parent=5 // pred_region
        %s769 = ssub.s32 %s14, 2
        // Predicated region
        $region41: #{tpu_custom_call.1} parent=39 // pred_check
          %p770 = pneg %p95
        $region42: #{tpu_custom_call.1} parent=39 // pred_check_branch
          %772 = sbr.rel (%p770) target = $region44
        $region43: #{tpu_custom_call.1} parent=39 // pred_region
          %s773 = sand.u32 %s80, 1
          %s774 = scalar_lea.sflag [#allocation4], %s773
          %s775 = sand.u32 %s80, 1
          %s776 = smul.addr %s775, 616
          %s777 = scalar_lea.vmem [#allocation5], %s776
          %779 = dma.done %s774, 9856
        $region44: #{tpu_custom_call.1} parent=39 // pred_fallthru
          _
      $region40: #{tpu_custom_call.1} parent=5 // pred_fallthru
        _
    $region6: #{tpu_custom_call.1} parent=1 // loop_footer
      %s18 = sadd.s32 1, %s14
    $region7: #{tpu_custom_call.1} parent=1 // loop_footer_branch
      %13 = sbr.rel target = $region3
    $region8: #{tpu_custom_call.1} parent=1 // loop_exit
      _
    %780 = vsyncpa [#allocation3], 1
    %s781 = scalar_lea.sflag [#allocation3], 1
    %782 = vsyncpa %s781, 1
    %783 = vsyncpa [#allocation4], 1
    %s784 = scalar_lea.sflag [#allocation4], 1
    %785 = vsyncpa %s784, 1

</llo_original>
